<compile_context>
chip_gen: v6e
topology: v6e:2x2x1
jax: 0.10.0
libtpu: 0.0.40
codegen_flags: <defaults>
</compile_context>

<pallas_src>
import functools
import math

import jax
import jax.numpy as jnp
from jax.experimental import pallas as pl
from jax.experimental.pallas import tpu as pltpu


def _vmem_estimate(S, B, D, tq, in_sz, w_sz, out_sz, return_weights):
    keys = 2 * B * S * D * in_sz               # persistent (B,S,D) + (B,D,S) key scratches
    staging = S * B * D * in_sz                # scoped raw copy of x (flat-summed, conservative)
    tiles = 3 * B * tq * S * 4                 # live f32 (B,tq,S) softmax temporaries (upper bound)
    wout = (2 * B * tq * S * w_sz) if return_weights else 0   # double-buffered weights out block
    oblk = 2 * tq * B * D * max(out_sz, 4)     # double-buffered out block
    return keys + staging + tiles + wout + oblk + (2 << 20)


def _choose_tq(S, B, D, in_sz, w_sz, out_sz, return_weights, budget, tq_cap):
    cands = [c for c in (256, 128, 64, 32, 16, 8) if S % c == 0 and c <= tq_cap]
    if not cands:
        # TODO(synk): pad S to a multiple of 8 instead of falling back to a full-S tile.
        return S
    lt = [c for c in cands if c < S]
    if lt:                 # prefer >=2 row tiles so the outer 'parallel' axis can split cores
        cands = lt
    for c in cands:
        if _vmem_estimate(S, B, D, c, in_sz, w_sz, out_sz, return_weights) <= budget:
            return c
    return cands[-1]


def _self_attn_kernel(x_hbm, gamma_ref, beta_ref, out_ref, *rest,
                      tq, inner_n, inv_sqrt_dim, eps, flatten, has_weights):
    if has_weights:
        w_ref = rest[0]
        xk_ref, xkT_ref = rest[1], rest[2]
    else:
        w_ref = None
        xk_ref, xkT_ref = rest[0], rest[1]

    B = xk_ref.shape[0]
    S = xk_ref.shape[1]
    D = xk_ref.shape[2]

    # ---- one-time key load + relayout per core chunk (inner grid index == 0) -----------
    # Keyed on the inner 'arbitrary' axis so each TensorCore chunk of the outer 'parallel'
    # axis initialises its own VMEM scratch (correct under megacore sharding).
    @pl.when(pl.program_id(1) == 0)
    def _prologue():
        def _load(raw):
            pltpu.sync_copy(x_hbm, raw)                       # single contiguous HBM->VMEM DMA
            xb = pltpu.einshape("sbd->bsd", raw[...])         # (B, S, D) batch-major keys
            xk_ref[...] = xb
            xkT_ref[...] = pltpu.einshape("bsd->bds", xb)     # (B, D, S) MXU-friendly RHS
        # Scoped staging buffer: the raw (S,B,D) copy does not persist past the prologue.
        pl.run_scoped(_load, pltpu.VMEM((S, B, D), xk_ref.dtype))

    # ---- current query-row tile ---------------------------------------------------------
    row = pl.program_id(0) * inner_n + pl.program_id(1)
    if tq == S:
        xq = xk_ref[...]                                      # (B, S, D)
    else:
        q0 = pl.multiple_of(row * tq, tq)
        xq = xk_ref[:, pl.ds(q0, tq), :]                      # (B, tq, D)

    # Scaled scores, stationary-RHS form (contract D against (B,D,S)); f32 accumulate.
    s = jnp.einsum("bqd,bds->bqs", xq, xkT_ref[...],
                   preferred_element_type=jnp.float32) * inv_sqrt_dim

    # Softmax with bounded temporaries: overwrite scores with exp, one EUP reciprocal/row.
    s = jnp.exp(s - jnp.max(s, axis=-1, keepdims=True))
    w = s * pl.reciprocal(jnp.sum(s, axis=-1, keepdims=True), approx=True)   # (B,tq,S) f32

    if w_ref is not None:                                     # optional write-back
        w_ref[...] = w.astype(w_ref.dtype)

    # Attention mix; feed the MXU in the input dtype, f32 accumulate.
    mix = jnp.einsum("bqk,bkd->bqd", w.astype(xk_ref.dtype), xk_ref[...],
                     preferred_element_type=jnp.float32)      # (B, tq, D)

    # LayerNorm over D (two-pass moments — avoids E[x^2]-mean^2 cancellation).
    mean = jnp.mean(mix, axis=-1, keepdims=True)
    c = mix - mean
    var = jnp.mean(c * c, axis=-1, keepdims=True)
    y = c * jax.lax.rsqrt(var + eps)
    y = y * gamma_ref[0] + beta_ref[0]                        # (B, tq, D) f32

    # Output store. Lane-dense flattened (tq, B*D) slab when D < 128 (unmasked vst path);
    # otherwise write the native (tq, B, D) block.
    if flatten:
        if B == 1:
            flat = y[0]
        else:
            flat = jnp.concatenate([y[b] for b in range(B)], axis=-1)   # (tq, B*D)
        out_ref[...] = flat.astype(out_ref.dtype)
    else:
        out_ref[...] = pltpu.einshape("bqd->qbd", y).astype(out_ref.dtype)


def self_attention_block(inputs_sbd, gamma, beta, eps=1e-5,
                         return_weights=True, weights_dtype=jnp.float32):
    """inputs_sbd: (S, B, D). Returns (out (S,B,D), weights (B,S,S)) or just out.

    weights_dtype may be set to jnp.bfloat16 to halve the (B,S,S) write-back traffic."""
    S, B, D = inputs_sbd.shape
    in_sz = jnp.dtype(inputs_sbd.dtype).itemsize
    w_sz = jnp.dtype(weights_dtype).itemsize
    out_sz = in_sz

    # Generation-aware VMEM budget (v7x: 64 MiB/TC -> TQ<=128, <=48 MiB scoped;
    # v5e/v6e: 128 MiB -> larger tiles / ~100 MiB cap).
    try:
        vmem_cap = int(getattr(pltpu.get_tpu_info(), "vmem_capacity_bytes", 0)) or (64 << 20)
    except Exception:                                         # conservative fallback
        vmem_cap = 64 << 20
    small_vmem = vmem_cap <= (80 << 20)
    gen_cap = (48 << 20) if small_vmem else (100 << 20)
    tq_cap = 128 if small_vmem else 256

    tq = _choose_tq(S, B, D, in_sz, w_sz, out_sz, return_weights,
                    budget=int(0.6 * gen_cap), tq_cap=tq_cap)
    nq = S // tq
    # Outer 'parallel' axis of size 2 when possible so v7x's two TensorCores each take a
    # contiguous chunk of row tiles; inner axis is 'arbitrary' (sequential per core).
    ns = 2 if (nq >= 2 and nq % 2 == 0) else 1
    # TODO(synk): when nq == 1 (S <= 8 here) only one TensorCore is used on v7x; a batch
    # grid split would need B (or B*D) tiling compatible with the (8,128) block rules.
    inner_n = nq // ns

    flatten = (D < 128) and (B <= 16)

    kernel = functools.partial(
        _self_attn_kernel, tq=tq, inner_n=inner_n, inv_sqrt_dim=1.0 / math.sqrt(D),
        eps=eps, flatten=flatten, has_weights=return_weights)

    if flatten:
        out_struct = jax.ShapeDtypeStruct((S, B * D), inputs_sbd.dtype)
        out_spec = pl.BlockSpec((tq, B * D), lambda oi, qi: (oi * inner_n + qi, 0))
    else:
        out_struct = jax.ShapeDtypeStruct((S, B, D), inputs_sbd.dtype)
        out_spec = pl.BlockSpec((tq, B, D), lambda oi, qi: (oi * inner_n + qi, 0, 0))

    if return_weights:
        out_shape = (out_struct, jax.ShapeDtypeStruct((B, S, S), weights_dtype))
        out_specs = (out_spec,
                     pl.BlockSpec((B, tq, S), lambda oi, qi: (0, oi * inner_n + qi, 0)))
    else:
        out_shape = out_struct
        out_specs = out_spec

    est = _vmem_estimate(S, B, D, tq, in_sz, w_sz, out_sz, return_weights)
    vmem_limit = int(min(gen_cap, max(32 << 20, int(1.5 * est))))

    cost = pl.CostEstimate(
        flops=4 * B * S * S * D,
        transcendentals=B * S * S,
        bytes_accessed=(S * B * D * in_sz + S * B * D * out_sz
                        + (B * S * S * w_sz if return_weights else 0)))

    grid_spec = pltpu.PrefetchScalarGridSpec(
        num_scalar_prefetch=0,
        grid=(ns, inner_n),
        in_specs=[
            # x stays in HBM: one manual DMA per core chunk, no double-buffered raw copy.
            pl.BlockSpec(memory_space=pl.ANY),
            # gamma/beta are tiny (2*D f32) — BlockSpec double-buffering is negligible.
            pl.BlockSpec((1, D), lambda oi, qi: (0, 0)),
            pl.BlockSpec((1, D), lambda oi, qi: (0, 0)),
        ],
        out_specs=out_specs,
        scratch_shapes=[
            pltpu.VMEM((B, S, D), inputs_sbd.dtype),   # keys, batch-major (mix RHS + xq slices)
            pltpu.VMEM((B, D, S), inputs_sbd.dtype),   # keys, (D,S)-major (scores RHS)
        ],
    )

    result = pl.pallas_call(
        kernel,
        out_shape=out_shape,
        grid_spec=grid_spec,
        compiler_params=pltpu.CompilerParams(
            dimension_semantics=("parallel", "arbitrary"),
            vmem_limit_bytes=vmem_limit),
        cost_estimate=cost,
    )(inputs_sbd, gamma.reshape(1, D), beta.reshape(1, D))

    if return_weights:
        out, weights = result
    else:
        out, weights = result, None
    if flatten:
        out = out.reshape(S, B, D)                    # contiguous, free reshape
    return (out, weights) if return_weights else out


def _reference(inputs_sbd, gamma, beta, eps=1e-5):
    x = jnp.transpose(inputs_sbd, (1, 0, 2)).astype(jnp.float32)   # (B, S, D)
    d = x.shape[-1]
    scores = jnp.einsum('bsd,btd->bst', x, x) / jnp.sqrt(jnp.float32(d))
    w = jax.nn.softmax(scores, axis=-1)
    mix = jnp.einsum('bst,btd->bsd', w, x)
    out = jnp.transpose(mix, (1, 0, 2))                            # (S, B, D)
    mean = jnp.mean(out, axis=-1, keepdims=True)
    var = jnp.mean((out - mean) ** 2, axis=-1, keepdims=True)
    out = (out - mean) / jnp.sqrt(var + eps) * gamma + beta
    return out.astype(inputs_sbd.dtype), w


if __name__ == "__main__":
    S, B, D = 8, 2, 32          # seq=8, batch=2, dim=32
    key = jax.random.PRNGKey(0)
    inputs = jax.random.normal(key, (S, B, D), dtype=jnp.float32)

    # LayerNorm params: deterministic PyTorch-default init (weight=1, bias=0).
    gamma = jnp.ones((D,), dtype=jnp.float32)
    beta = jnp.zeros((D,), dtype=jnp.float32)
    # dropout=0.0 (PyTorch default) -> no dropout layer is created.
    # TODO(synk): 2-D input path ((N, D) -> bmm over unsqueezed dim) not implemented;
    # only the 3-D (seq, batch, dim) path is kernelised here.
    # TODO(synk): keys are kept fully resident (2*B*S*D in VMEM); very long sequences
    # would need flash-style kv tiling with an online softmax.

    # Tolerances relaxed to 2e-3 because the softmax denominator uses the EUP
    # approx-reciprocal (error ~1e-4 relative).
    out, weights = self_attention_block(inputs, gamma, beta)
    jax.block_until_ready((out, weights))
    ref_out, ref_w = _reference(inputs, gamma, beta)
    assert jnp.allclose(out, ref_out, atol=2e-3, rtol=2e-3)
    assert jnp.allclose(weights, ref_w, atol=2e-3, rtol=2e-3)

    # Multi-tile path (tq < S): exercises query tiling + the (parallel, arbitrary) grid.
    S2 = 16
    inputs2 = jax.random.normal(jax.random.PRNGKey(0), (S2, B, D), dtype=jnp.float32)
    out2, w2 = self_attention_block(inputs2, gamma, beta)
    jax.block_until_ready((out2, w2))
    ref_out2, ref_w2 = _reference(inputs2, gamma, beta)
    assert jnp.allclose(out2, ref_out2, atol=2e-3, rtol=2e-3)
    assert jnp.allclose(w2, ref_w2, atol=2e-3, rtol=2e-3)

    # Weights-free fast path (skips the B*S*S write-back).
    out_only = self_attention_block(inputs, gamma, beta, return_weights=False)
    jax.block_until_ready(out_only)
    assert jnp.allclose(out_only, ref_out, atol=2e-3, rtol=2e-3)

    print("KERNEL_OK")
</pallas_src>

<mosaic_0001>
module attributes {stable_mosaic.version = 11 : i64} {
  func.func @_self_attn_kernel(%arg0: i32, %arg1: i32, %arg2: memref<8x2x32xf32, #tpu.memory_space<any>>, %arg3: memref<1x32xf32, #tpu.memory_space<vmem>>, %arg4: memref<1x32xf32, #tpu.memory_space<vmem>>, %arg5: memref<8x64xf32, #tpu.memory_space<vmem>>, %arg6: memref<2x8x8xf32, #tpu.memory_space<vmem>>, %arg7: memref<2x8x32xf32, #tpu.memory_space<vmem>>, %arg8: memref<2x32x8xf32, #tpu.memory_space<vmem>>) attributes {dimension_semantics = [#tpu.dimension_semantics<parallel>, #tpu.dimension_semantics<arbitrary>], iteration_bounds = array<i64: 1, 1>, scalar_prefetch = 0 : i64, scratch_operands = 2 : i64, tpu.core_type = #tpu.core_type<tc>, window_params = [{}, {pipeline_mode = #tpu.pipeline_mode<synchronous>, transform_indices = @transform_1, window_bounds = array<i64: 1, 32>}, {pipeline_mode = #tpu.pipeline_mode<synchronous>, transform_indices = @transform_2, window_bounds = array<i64: 1, 32>}, {transform_indices = @transform_3, window_bounds = array<i64: 8, 64>}, {transform_indices = @transform_4, window_bounds = array<i64: 2, 8, 8>}]} {
    %c0_i32 = arith.constant 0 : i32
    %0 = arith.cmpi eq, %arg1, %c0_i32 : i32
    %1 = arith.extui %0 : i1 to i32
    %c0_i32_0 = arith.constant 0 : i32
    %2 = arith.cmpi ne, %1, %c0_i32_0 : i32
    scf.if %2 {
      "tpu.region"() ({
        %alloca = memref.alloca() : memref<8x2x32xf32, #tpu.memory_space<vmem>>
        "tpu.region"() ({
          %58 = tpu.sem_alloc : memref<!tpu.dma_semaphore, #tpu.memory_space<semaphore_mem>>
          tpu.enqueue_dma source(%arg2 : memref<8x2x32xf32, #tpu.memory_space<any>>) target(%alloca : memref<8x2x32xf32, #tpu.memory_space<vmem>>) target_semaphore(%58 : memref<!tpu.dma_semaphore, #tpu.memory_space<semaphore_mem>>)
          tpu.wait_dma2 semaphore(%58 : memref<!tpu.dma_semaphore, #tpu.memory_space<semaphore_mem>>) src(%arg2 : memref<8x2x32xf32, #tpu.memory_space<any>>) dst(%alloca : memref<8x2x32xf32, #tpu.memory_space<vmem>>)
          tpu.yield
        }) : () -> ()
        %c0_27 = arith.constant 0 : index
        %c0_28 = arith.constant 0 : index
        %c0_29 = arith.constant 0 : index
        %53 = vector.load %alloca[%c0_27, %c0_28, %c0_29] : memref<8x2x32xf32, #tpu.memory_space<vmem>>, vector<8x2x32xf32>
        %54 = tpu.transpose %53, [1, 0, 2] : vector<8x2x32xf32> -> vector<2x8x32xf32>
        %c0_30 = arith.constant 0 : index
        %c0_31 = arith.constant 0 : index
        %c0_32 = arith.constant 0 : index
        %55 = vector.load %arg7[%c0_30, %c0_31, %c0_32] : memref<2x8x32xf32, #tpu.memory_space<vmem>>, vector<2x8x32xf32>
        tpu.vector_store %arg7[%c0_30, %c0_31, %c0_32], %54 {strides = array<i32>} : memref<2x8x32xf32, #tpu.memory_space<vmem>>, vector<2x8x32xf32>,
        %56 = tpu.transpose %54, [0, 2, 1] : vector<2x8x32xf32> -> vector<2x32x8xf32>
        %c0_33 = arith.constant 0 : index
        %c0_34 = arith.constant 0 : index
        %c0_35 = arith.constant 0 : index
        %57 = vector.load %arg8[%c0_33, %c0_34, %c0_35] : memref<2x32x8xf32, #tpu.memory_space<vmem>>, vector<2x32x8xf32>
        tpu.vector_store %arg8[%c0_33, %c0_34, %c0_35], %56 {strides = array<i32>} : memref<2x32x8xf32, #tpu.memory_space<vmem>>, vector<2x32x8xf32>,
        tpu.yield
      }) : () -> ()
    } else {
    }
    %c0 = arith.constant 0 : index
    %c0_1 = arith.constant 0 : index
    %c0_2 = arith.constant 0 : index
    %3 = vector.load %arg7[%c0, %c0_1, %c0_2] : memref<2x8x32xf32, #tpu.memory_space<vmem>>, vector<2x8x32xf32>
    %c0_3 = arith.constant 0 : index
    %c0_4 = arith.constant 0 : index
    %c0_5 = arith.constant 0 : index
    %4 = vector.load %arg8[%c0_3, %c0_4, %c0_5] : memref<2x32x8xf32, #tpu.memory_space<vmem>>, vector<2x32x8xf32>
    "tpu.trace_start"() <{level = 10 : i32, message = "bqd,bds->bqs"}> : () -> ()
    %cst = arith.constant dense<0.000000e+00> : vector<2x8x8xf32>
    %5 = tpu.matmul %3, %4, %cst {dimension_numbers = #tpu.dot_dimension_numbers<[2], [1], [1], [2], [0, 0, 0, 1, 1, 2], [0], [0]>} : vector<2x8x32xf32>, vector<2x32x8xf32>, vector<2x8x8xf32> -> vector<2x8x8xf32>
    "tpu.trace_stop"() : () -> ()
    %cst_6 = arith.constant 0.176776692 : f32
    %6 = vector.broadcast %cst_6 : f32 to vector<2x8x8xf32>
    %7 = arith.mulf %5, %6 : vector<2x8x8xf32>
    %cst_7 = arith.constant dense<0xFF800000> : vector<2x8xf32>
    %8 = vector.multi_reduction <maximumf>, %7, %cst_7 [2] : vector<2x8x8xf32> to vector<2x8xf32>
    %9 = vector.shape_cast %8 : vector<2x8xf32> to vector<2x8x1xf32>
    %10 = vector.broadcast %9 : vector<2x8x1xf32> to vector<2x8x8xf32>
    %11 = arith.subf %7, %10 : vector<2x8x8xf32>
    %12 = math.exp %11 : vector<2x8x8xf32>
    %cst_8 = arith.constant dense<0.000000e+00> : vector<2x8xf32>
    %13 = vector.multi_reduction <add>, %12, %cst_8 [2] : vector<2x8x8xf32> to vector<2x8xf32>
    %14 = vector.shape_cast %13 : vector<2x8xf32> to vector<2x8x1xf32>
    %15 = tpu.reciprocal %14 {approx = true} : vector<2x8x1xf32> -> vector<2x8x1xf32>
    %16 = vector.broadcast %15 : vector<2x8x1xf32> to vector<2x8x8xf32>
    %17 = arith.mulf %12, %16 : vector<2x8x8xf32>
    %c0_9 = arith.constant 0 : index
    %c0_10 = arith.constant 0 : index
    %c0_11 = arith.constant 0 : index
    %18 = vector.load %arg6[%c0_9, %c0_10, %c0_11] : memref<2x8x8xf32, #tpu.memory_space<vmem>>, vector<2x8x8xf32>
    tpu.vector_store %arg6[%c0_9, %c0_10, %c0_11], %17 {strides = array<i32>} : memref<2x8x8xf32, #tpu.memory_space<vmem>>, vector<2x8x8xf32>,
    %c0_12 = arith.constant 0 : index
    %c0_13 = arith.constant 0 : index
    %c0_14 = arith.constant 0 : index
    %19 = vector.load %arg7[%c0_12, %c0_13, %c0_14] : memref<2x8x32xf32, #tpu.memory_space<vmem>>, vector<2x8x32xf32>
    "tpu.trace_start"() <{level = 10 : i32, message = "bqk,bkd->bqd"}> : () -> ()
    %cst_15 = arith.constant dense<0.000000e+00> : vector<2x8x32xf32>
    %20 = tpu.matmul %17, %19, %cst_15 {dimension_numbers = #tpu.dot_dimension_numbers<[2], [1], [1], [2], [0, 0, 0, 1, 1, 2], [0], [0]>} : vector<2x8x8xf32>, vector<2x8x32xf32>, vector<2x8x32xf32> -> vector<2x8x32xf32>
    "tpu.trace_stop"() : () -> ()
    %cst_16 = arith.constant dense<0.000000e+00> : vector<2x8xf32>
    %21 = vector.multi_reduction <add>, %20, %cst_16 [2] : vector<2x8x32xf32> to vector<2x8xf32>
    %22 = vector.shape_cast %21 : vector<2x8xf32> to vector<2x8x1xf32>
    %cst_17 = arith.constant 3.200000e+01 : f32
    %23 = vector.broadcast %cst_17 : f32 to vector<2x8x1xf32>
    %24 = arith.divf %22, %23 : vector<2x8x1xf32>
    %25 = vector.broadcast %24 : vector<2x8x1xf32> to vector<2x8x32xf32>
    %26 = arith.subf %20, %25 : vector<2x8x32xf32>
    %27 = arith.mulf %26, %26 : vector<2x8x32xf32>
    %cst_18 = arith.constant dense<0.000000e+00> : vector<2x8xf32>
    %28 = vector.multi_reduction <add>, %27, %cst_18 [2] : vector<2x8x32xf32> to vector<2x8xf32>
    %29 = vector.shape_cast %28 : vector<2x8xf32> to vector<2x8x1xf32>
    %cst_19 = arith.constant 3.200000e+01 : f32
    %30 = vector.broadcast %cst_19 : f32 to vector<2x8x1xf32>
    %31 = arith.divf %29, %30 : vector<2x8x1xf32>
    %cst_20 = arith.constant 9.99999974E-6 : f32
    %32 = vector.broadcast %cst_20 : f32 to vector<2x8x1xf32>
    %33 = arith.addf %31, %32 : vector<2x8x1xf32>
    %34 = math.rsqrt %33 : vector<2x8x1xf32>
    %35 = vector.broadcast %34 : vector<2x8x1xf32> to vector<2x8x32xf32>
    %36 = arith.mulf %26, %35 : vector<2x8x32xf32>
    %c0_21 = arith.constant 0 : index
    %c0_22 = arith.constant 0 : index
    %37 = vector.load %arg3[%c0_21, %c0_22] : memref<1x32xf32, #tpu.memory_space<vmem>>, vector<1x32xf32>
    %38 = vector.shape_cast %37 : vector<1x32xf32> to vector<32xf32>
    %39 = vector.shape_cast %38 : vector<32xf32> to vector<1x1x32xf32>
    %40 = vector.broadcast %39 : vector<1x1x32xf32> to vector<2x8x32xf32>
    %41 = arith.mulf %36, %40 : vector<2x8x32xf32>
    %c0_23 = arith.constant 0 : index
    %c0_24 = arith.constant 0 : index
    %42 = vector.load %arg4[%c0_23, %c0_24] : memref<1x32xf32, #tpu.memory_space<vmem>>, vector<1x32xf32>
    %43 = vector.shape_cast %42 : vector<1x32xf32> to vector<32xf32>
    %44 = vector.shape_cast %43 : vector<32xf32> to vector<1x1x32xf32>
    %45 = vector.broadcast %44 : vector<1x1x32xf32> to vector<2x8x32xf32>
    %46 = arith.addf %41, %45 : vector<2x8x32xf32>
    %47 = vector.extract_strided_slice %46 {offsets = [0, 0, 0], sizes = [1, 8, 32], strides = [1, 1, 1]} : vector<2x8x32xf32> to vector<1x8x32xf32>
    %48 = vector.shape_cast %47 : vector<1x8x32xf32> to vector<8x32xf32>
    %49 = vector.extract_strided_slice %46 {offsets = [1, 0, 0], sizes = [1, 8, 32], strides = [1, 1, 1]} : vector<2x8x32xf32> to vector<1x8x32xf32>
    %50 = vector.shape_cast %49 : vector<1x8x32xf32> to vector<8x32xf32>
    %51 = tpu.concatenate %48, %50 in 1 : vector<8x32xf32>, vector<8x32xf32> -> vector<8x64xf32>
    %c0_25 = arith.constant 0 : index
    %c0_26 = arith.constant 0 : index
    %52 = vector.load %arg5[%c0_25, %c0_26] : memref<8x64xf32, #tpu.memory_space<vmem>>, vector<8x64xf32>
    tpu.vector_store %arg5[%c0_25, %c0_26], %51 {strides = array<i32>} : memref<8x64xf32, #tpu.memory_space<vmem>>, vector<8x64xf32>,
    return
  }
  func.func @transform_1(%arg0: i32, %arg1: i32) -> (i32, i32) {
    %c0_i32 = arith.constant 0 : i32
    %c0_i32_0 = arith.constant 0 : i32
    %c0_i32_1 = arith.constant 0 : i32
    return %c0_i32, %c0_i32_0 : i32, i32
  }
  func.func @transform_2(%arg0: i32, %arg1: i32) -> (i32, i32) {
    %c0_i32 = arith.constant 0 : i32
    %c0_i32_0 = arith.constant 0 : i32
    %c0_i32_1 = arith.constant 0 : i32
    return %c0_i32, %c0_i32_0 : i32, i32
  }
  func.func @transform_3(%arg0: i32, %arg1: i32) -> (i32, i32) {
    %c1_i32 = arith.constant 1 : i32
    %0 = arith.muli %arg0, %c1_i32 : i32
    %1 = arith.addi %0, %arg1 : i32
    %c0_i32 = arith.constant 0 : i32
    %c0_i32_0 = arith.constant 0 : i32
    return %1, %c0_i32 : i32, i32
  }
  func.func @transform_4(%arg0: i32, %arg1: i32) -> (i32, i32, i32) {
    %c1_i32 = arith.constant 1 : i32
    %0 = arith.muli %arg0, %c1_i32 : i32
    %1 = arith.addi %0, %arg1 : i32
    %c0_i32 = arith.constant 0 : i32
    %c0_i32_0 = arith.constant 0 : i32
    %c0_i32_1 = arith.constant 0 : i32
    return %c0_i32, %1, %c0_i32_0 : i32, i32, i32
  }
}

</mosaic_0001>

<llo_original>
// kernel: tpu_custom_call.1
$region0: #{tpu_custom_call.1}
  #allocation0 [shape = 'u32[]', space=smem, size = 0x4, offset = 0x4, fixed_abs, tag = 'smem constant byte address 0x4 - core index']
  #allocation1 [shape = 'u32[144,128]{1,0:T(1,128)}', space=vmem, size = 0x12000, scoped, tag = 'internal scratch']
  #allocation2 [shape = 'f32[2,8,32]{2,1,0:T(8,128)}', space=vmem, size = 0x2000, scoped, tag = 'scratch operand']
  #allocation3 [shape = 'f32[2,32,8]{2,1,0:T(8,128)}', space=vmem, size = 0x8000, scoped, tag = 'scratch operand']
  #allocation10 [shape = 's32[]', space=sflag, size = 0x4, offset = 0, fixed_abs, tag = 'sflag constant byte address 0x0 - dummy sync flag']
  #allocation11 [shape = 's32[]', space=sflag, size = 0x4, offset = 0, fixed_abs, tag = 'sflag constant byte address 0x0 - dummy sync flag']
  #allocation12 [shape = 'u32[]', space=smem, size = 0x4, offset = 0x44, fixed_abs, tag = 'smem constant byte address 0x44 - assertion arg 0']
  #allocation13 [shape = 'u32[]', space=smem, size = 0x4, offset = 0x48, fixed_abs, tag = 'smem constant byte address 0x48 - assertion arg 1']
  %s0 = inlined_call_operand.hbm [shape: f32[8,2,32], index: 0, kind: input, shape index: {}]
  %s1 = inlined_call_operand.vmem [shape: f32[1,32], index: 1, kind: input, shape index: {}]
  %s2 = inlined_call_operand.vmem [shape: f32[1,32], index: 2, kind: input, shape index: {}]
  %s3 = inlined_call_operand.hbm [shape: f32[8,64], index: 3, kind: output, shape index: {0}]
  %s4 = inlined_call_operand.hbm [shape: f32[2,8,8], index: 4, kind: output, shape index: {1}]
  %5 = xla_tuple %s3, %s4
  %s6 = sld [smem:[#allocation0]]
  $region36: #{tpu_custom_call.1} parent=0
    _
  %s8 = ssub.s32 1, %s6
  %s9 = scalar_select 0, %s8, %s6
  $region1: #{tpu_custom_call.1} parent=0
    #allocation4 [shape = 'u8[4096]{0}', space=vmem, size = 0x1000, scoped, tag = 'output window, operand 0, single buffered']
    #allocation5 [shape = 's32[1]{0}', space=sflag, size = 0x4, scoped, tag = 'scoped memory for tpu_custom_call.1']
    #allocation6 [shape = 'u8[8192]{0}', space=vmem, size = 0x2000, scoped, tag = 'output window, operand 1, single buffered']
    #allocation7 [shape = 's32[1]{0}', space=sflag, size = 0x4, scoped, tag = 'scoped memory for tpu_custom_call.1']
    %10 = vsyncpa [#allocation5], 0
    %11 = vsyncpa [#allocation7], 0
    // Predicated region
    $region2: #{tpu_custom_call.1} parent=1 // pred_check
      _
    $region3: #{tpu_custom_call.1} parent=1 // pred_check_branch
      %13 = sbr.rel (0) target = $region5
    $region4: #{tpu_custom_call.1} parent=1 // pred_region
      _
    $region5: #{tpu_custom_call.1} parent=1 // pred_fallthru
      _
    // Predicated region
    $region6: #{tpu_custom_call.1} parent=1 // pred_check
      _
    $region7: #{tpu_custom_call.1} parent=1 // pred_check_branch
      %15 = sbr.rel (0) target = $region9
    $region8: #{tpu_custom_call.1} parent=1 // pred_region
      _
    $region9: #{tpu_custom_call.1} parent=1 // pred_fallthru
      _
    %s16 = sadd.s32 0, 0
    %s17 = sadd.s32 0, 0
    %p18 = scmp.eq.s32.totalorder 0, 0
    // Predicated region
    $region10: #{tpu_custom_call.1} parent=1 // pred_check
      %p19 = pneg %p18
    $region11: #{tpu_custom_call.1} parent=1 // pred_check_branch
      %21 = sbr.rel (%p19) target = $region13
    $region12: #{tpu_custom_call.1} parent=1 // pred_region
      $region14: #{tpu_custom_call.1} parent=12
        #allocation8 [shape = 'u8[8192]{0}', space=vmem, size = 0x2000, scoped, tag = 'scoped memory for tpu_custom_call.1']
        $region15: #{tpu_custom_call.1} parent=14
          #allocation9 [shape = 's32[1]{0}', space=sflag, size = 0x4, scoped, tag = 'scoped memory for tpu_custom_call.1']
          // Predicated region
          $region16: #{tpu_custom_call.1} parent=15 // pred_check
            _
          $region17: #{tpu_custom_call.1} parent=15 // pred_check_branch
            %23 = sbr.rel target = $region19
          $region18: #{tpu_custom_call.1} parent=15 // pred_region
            %24 = sst [smem:[#allocation12]] [#allocation11]
            %25 = sst [smem:[#allocation13]] [#allocation10]
          $region19: #{tpu_custom_call.1} parent=15 // pred_fallthru
            _
          %27 = shalt.err (0)
          %s29 = sshll.u32 [#allocation8], 4
          %s30 = int_to_ptr.vmem [resolvable:$true] %s29
          %32 = dma.hbm_to_vmem [thread:$0]  %s0, 256, %s30, [#allocation9]
          %s33 = smul.u32 8, 2
          %s34 = smul.u32 %s33, 1
          %s35 = sshll.u32 %s34, 4
          %36 = dma.done [#allocation9], %s35
        %v37 = vld [vmem:[#allocation8] sm:$0x3]
        %v38 = vld [vmem:[#allocation8 + $0x2] sm:$0x3]
        %v39 = vld [vmem:[#allocation8 + $0x4] sm:$0x3]
        %v40 = vld [vmem:[#allocation8 + $0x6] sm:$0x3]
        %v41 = vld [vmem:[#allocation8 + $0x8] sm:$0x3]
        %v42 = vld [vmem:[#allocation8 + $0xa] sm:$0x3]
        %v43 = vld [vmem:[#allocation8 + $0xc] sm:$0x3]
        %v44 = vld [vmem:[#allocation8 + $0xe] sm:$0x3]
        %v45 = vcombine.low %v37, %v39
        %v47 = vunpack.c.l.s4 1983009808
        %v48 = vunpack.c.0.s8 %v47
        %v49 = vlaneseq
        %v50 = vshrl.u32 %v49, 7
        %v51 = vsub.s32 %v48, %v50
        %v52 = vrot.slane %v45, %v51
        %v53 = vcombine.low %v38, %v40
        %v55 = vunpack.c.l.s4 1983009808
        %v56 = vunpack.c.0.s8 %v55
        %v57 = vlaneseq
        %v58 = vshrl.u32 %v57, 7
        %v59 = vsub.s32 %v56, %v58
        %v60 = vrot.slane %v53, %v59
        %v61 = vcombine.low %v41, %v43
        %v63 = vunpack.c.l.s4 1983009808
        %v64 = vunpack.c.0.s8 %v63
        %v65 = vlaneseq
        %v66 = vshrl.u32 %v65, 7
        %v67 = vsub.s32 %v64, %v66
        %v68 = vrot.slane %v61, %v67
        %v69 = vcombine.low %v42, %v44
        %v71 = vunpack.c.l.s4 1983009808
        %v72 = vunpack.c.0.s8 %v71
        %v73 = vlaneseq
        %v74 = vshrl.u32 %v73, 7
        %v75 = vsub.s32 %v72, %v74
        %v76 = vrot.slane %v69, %v75
        %v77 = vcombine.low %v52, %v60
        %v79 = vunpack.c.l.s4 1934713408
        %v80 = vunpack.c.0.s8 %v79
        %v81 = vlaneseq
        %v82 = vshrl.u32 %v81, 7
        %v83 = vsub.s32 %v80, %v82
        %v84 = vrot.slane %v77, %v83
        %v85 = vcombine.low %v68, %v76
        %v87 = vunpack.c.l.s4 1934713408
        %v88 = vunpack.c.0.s8 %v87
        %v89 = vlaneseq
        %v90 = vshrl.u32 %v89, 7
        %v91 = vsub.s32 %v88, %v90
        %v92 = vrot.slane %v85, %v91
        %v93 = vcombine.low %v84, %v92
        %v94 = vcombine.high %v84, %v92
        %vm95 = vcmask 261120
        %96 = vst.msk [vmem:[#allocation2] sm:$0xff] %vm95, %v93
        %97 = vst.msk [vmem:[#allocation2 + $0x8] sm:$0xff] %vm95, %v94
        %98 = vxpose.xlu0.b32.start [1/16] %v93, 128
        %99 = vxpose.xlu0.b32.cont [2/16] 0.0, 128
        %100 = vxpose.xlu0.b32.cont [3/16] 0.0, 128
        %101 = vxpose.xlu0.b32.cont [4/16] 0.0, 128
        %102 = vxpose.xlu0.b32.cont [5/16] 0.0, 128
        %103 = vxpose.xlu0.b32.cont [6/16] 0.0, 128
        %104 = vxpose.xlu0.b32.cont [7/16] 0.0, 128
        %105 = vxpose.xlu0.b32.cont [8/16] 0.0, 128
        %106 = vxpose.xlu0.b32.cont [9/16] 0.0, 128
        %107 = vxpose.xlu0.b32.cont [10/16] 0.0, 128
        %108 = vxpose.xlu0.b32.cont [11/16] 0.0, 128
        %109 = vxpose.xlu0.b32.cont [12/16] 0.0, 128
        %110 = vxpose.xlu0.b32.cont [13/16] 0.0, 128
        %111 = vxpose.xlu0.b32.cont [14/16] 0.0, 128
        %112 = vxpose.xlu0.b32.cont [15/16] 0.0, 128
        %113 = vxpose.xlu0.b32.end [16/16] 0.0, 128
        %v114 = vpop.trf.xlu0
        %v115 = vpop.trf.xlu0
        %v116 = vpop.trf.xlu0
        %v117 = vpop.trf.xlu0
        %v118 = vpop.trf.xlu0
        %v119 = vpop.trf.xlu0
        %v120 = vpop.trf.xlu0
        %v121 = vpop.trf.xlu0
        %v122 = vpop.trf.xlu0
        %v123 = vpop.trf.xlu0
        %v124 = vpop.trf.xlu0
        %v125 = vpop.trf.xlu0
        %v126 = vpop.trf.xlu0
        %v127 = vpop.trf.xlu0
        %v128 = vpop.trf.xlu0
        %v129 = vpop.trf.xlu0
        %130 = vxpose.xlu0.b32.start [1/16] %v94, 128
        %131 = vxpose.xlu0.b32.cont [2/16] 0.0, 128
        %132 = vxpose.xlu0.b32.cont [3/16] 0.0, 128
        %133 = vxpose.xlu0.b32.cont [4/16] 0.0, 128
        %134 = vxpose.xlu0.b32.cont [5/16] 0.0, 128
        %135 = vxpose.xlu0.b32.cont [6/16] 0.0, 128
        %136 = vxpose.xlu0.b32.cont [7/16] 0.0, 128
        %137 = vxpose.xlu0.b32.cont [8/16] 0.0, 128
        %138 = vxpose.xlu0.b32.cont [9/16] 0.0, 128
        %139 = vxpose.xlu0.b32.cont [10/16] 0.0, 128
        %140 = vxpose.xlu0.b32.cont [11/16] 0.0, 128
        %141 = vxpose.xlu0.b32.cont [12/16] 0.0, 128
        %142 = vxpose.xlu0.b32.cont [13/16] 0.0, 128
        %143 = vxpose.xlu0.b32.cont [14/16] 0.0, 128
        %144 = vxpose.xlu0.b32.cont [15/16] 0.0, 128
        %145 = vxpose.xlu0.b32.end [16/16] 0.0, 128
        %v146 = vpop.trf.xlu0
        %v147 = vpop.trf.xlu0
        %v148 = vpop.trf.xlu0
        %v149 = vpop.trf.xlu0
        %v150 = vpop.trf.xlu0
        %v151 = vpop.trf.xlu0
        %v152 = vpop.trf.xlu0
        %v153 = vpop.trf.xlu0
        %v154 = vpop.trf.xlu0
        %v155 = vpop.trf.xlu0
        %v156 = vpop.trf.xlu0
        %v157 = vpop.trf.xlu0
        %v158 = vpop.trf.xlu0
        %v159 = vpop.trf.xlu0
        %v160 = vpop.trf.xlu0
        %v161 = vpop.trf.xlu0
        %vm162 = vcmask 64512
        %163 = vst.msk [vmem:[#allocation3] sm:$0xff] %vm162, %v114
        %164 = vst.msk [vmem:[#allocation3 + $0x8] sm:$0xff] %vm162, %v115
        %165 = vst.msk [vmem:[#allocation3 + $0x10] sm:$0xff] %vm162, %v116
        %166 = vst.msk [vmem:[#allocation3 + $0x18] sm:$0xff] %vm162, %v117
        %167 = vst.msk [vmem:[#allocation3 + $0x20] sm:$0xff] %vm162, %v146
        %168 = vst.msk [vmem:[#allocation3 + $0x28] sm:$0xff] %vm162, %v147
        %169 = vst.msk [vmem:[#allocation3 + $0x30] sm:$0xff] %vm162, %v148
        %170 = vst.msk [vmem:[#allocation3 + $0x38] sm:$0xff] %vm162, %v149
    $region13: #{tpu_custom_call.1} parent=1 // pred_fallthru
      _
    %v171 = vld [vmem:[#allocation2] sm:$0xff]
    %v172 = vld [vmem:[#allocation2 + $0x8] sm:$0xff]
    %v173 = vld [vmem:[#allocation3] sm:$0xff]
    %v174 = vld [vmem:[#allocation3 + $0x8] sm:$0xff]
    %v175 = vld [vmem:[#allocation3 + $0x10] sm:$0xff]
    %v176 = vld [vmem:[#allocation3 + $0x18] sm:$0xff]
    %v177 = vld [vmem:[#allocation3 + $0x20] sm:$0xff]
    %v178 = vld [vmem:[#allocation3 + $0x28] sm:$0xff]
    %v179 = vld [vmem:[#allocation3 + $0x30] sm:$0xff]
    %v180 = vld [vmem:[#allocation3 + $0x38] sm:$0xff]
    %vm181 = vcmask 261120
    %v183 = vsel %vm181, %v171, 0
    %185 = vmatprep.subr.mxu0 0.0
    %186 = vmatpush1.msra.mxu0 0.0
    %187 = vmatprep.subr.mxu0 0.0
    %188 = vmatpush1.msra.mxu0 0.0
    %189 = vmatprep.subr.mxu0 0.0
    %190 = vmatpush1.msra.mxu0 0.0
    %191 = vmatprep.subr.mxu0 0.0
    %192 = vmatpush1.msra.mxu0 0.0
    %193 = vmatprep.subr.mxu0 0.0
    %194 = vmatpush1.msra.mxu0 0.0
    %195 = vmatprep.subr.mxu0 0.0
    %196 = vmatpush1.msra.mxu0 0.0
    %197 = vmatprep.subr.mxu0 0.0
    %198 = vmatpush1.msra.mxu0 0.0
    %199 = vmatprep.subr.mxu0 0.0
    %200 = vmatpush1.msra.mxu0 0.0
    %201 = vmatprep.subr.mxu0 0.0
    %202 = vmatpush1.msra.mxu0 0.0
    %203 = vmatprep.subr.mxu0 0.0
    %204 = vmatpush1.msra.mxu0 0.0
    %205 = vmatprep.subr.mxu0 0.0
    %206 = vmatpush1.msra.mxu0 0.0
    %207 = vmatprep.subr.mxu0 0.0
    %208 = vmatpush1.msra.mxu0 0.0
    %209 = vmatprep.subr.mxu0 0.0
    %210 = vmatpush1.msra.mxu0 %v176
    %211 = vmatprep.subr.mxu0 0.0
    %212 = vmatpush1.msra.mxu0 %v175
    %213 = vmatprep.subr.mxu0 0.0
    %214 = vmatpush1.msra.mxu0 %v174
    %215 = vmatprep.subr.mxu0 0.0
    %216 = vmatpush1.msra.mxu0 %v173
    %217 = vmatprep.subr.mxu0 0.0
    %218 = vmatpush2.msra.mxu0 0.0
    %219 = vmatprep.subr.mxu0 0.0
    %220 = vmatpush2.msra.mxu0 0.0
    %221 = vmatprep.subr.mxu0 0.0
    %222 = vmatpush2.msra.mxu0 0.0
    %223 = vmatprep.subr.mxu0 0.0
    %224 = vmatpush2.msra.mxu0 0.0
    %225 = vmatprep.subr.mxu0 0.0
    %226 = vmatpush2.msra.mxu0 0.0
    %227 = vmatprep.subr.mxu0 0.0
    %228 = vmatpush2.msra.mxu0 0.0
    %229 = vmatprep.subr.mxu0 0.0
    %230 = vmatpush2.msra.mxu0 0.0
    %231 = vmatprep.subr.mxu0 0.0
    %232 = vmatpush2.msra.mxu0 0.0
    %233 = vmatprep.subr.mxu0 0.0
    %234 = vmatpush2.msra.mxu0 0.0
    %235 = vmatprep.subr.mxu0 0.0
    %236 = vmatpush2.msra.mxu0 0.0
    %237 = vmatprep.subr.mxu0 0.0
    %238 = vmatpush2.msra.mxu0 0.0
    %239 = vmatprep.subr.mxu0 0.0
    %240 = vmatpush2.msra.mxu0 0.0
    %241 = vmatprep.subr.mxu0 0.0
    %242 = vmatpush2.msra.mxu0 0.0
    %243 = vmatprep.subr.mxu0 0.0
    %244 = vmatpush2.msra.mxu0 0.0
    %245 = vmatprep.subr.mxu0 0.0
    %246 = vmatpush2.msra.mxu0 0.0
    %247 = vmatprep.subr.mxu0 0.0
    %248 = vmatpush2.msra.mxu0 0.0
    %249 = vmatprep.mubr.f32.mxu0 0.0
    %250 = vmatmul.mubr.f32.gmra.mxu0 %v183
    %v251 = vpop.f32.mrf.mxu0
    %v252 = vadd.f32 0.0, %v251
    %v253 = vpop.f32.mrf.mxu0
    %254 = vdwg.mxu0
    %v256 = vsel %vm181, %v172, 0
    %258 = vmatprep.subr.mxu0 0.0
    %259 = vmatpush1.msra.mxu0 0.0
    %260 = vmatprep.subr.mxu0 0.0
    %261 = vmatpush1.msra.mxu0 0.0
    %262 = vmatprep.subr.mxu0 0.0
    %263 = vmatpush1.msra.mxu0 0.0
    %264 = vmatprep.subr.mxu0 0.0
    %265 = vmatpush1.msra.mxu0 0.0
    %266 = vmatprep.subr.mxu0 0.0
    %267 = vmatpush1.msra.mxu0 0.0
    %268 = vmatprep.subr.mxu0 0.0
    %269 = vmatpush1.msra.mxu0 0.0
    %270 = vmatprep.subr.mxu0 0.0
    %271 = vmatpush1.msra.mxu0 0.0
    %272 = vmatprep.subr.mxu0 0.0
    %273 = vmatpush1.msra.mxu0 0.0
    %274 = vmatprep.subr.mxu0 0.0
    %275 = vmatpush1.msra.mxu0 0.0
    %276 = vmatprep.subr.mxu0 0.0
    %277 = vmatpush1.msra.mxu0 0.0
    %278 = vmatprep.subr.mxu0 0.0
    %279 = vmatpush1.msra.mxu0 0.0
    %280 = vmatprep.subr.mxu0 0.0
    %281 = vmatpush1.msra.mxu0 0.0
    %282 = vmatprep.subr.mxu0 0.0
    %283 = vmatpush1.msra.mxu0 %v180
    %284 = vmatprep.subr.mxu0 0.0
    %285 = vmatpush1.msra.mxu0 %v179
    %286 = vmatprep.subr.mxu0 0.0
    %287 = vmatpush1.msra.mxu0 %v178
    %288 = vmatprep.subr.mxu0 0.0
    %289 = vmatpush1.msra.mxu0 %v177
    %290 = vmatprep.subr.mxu0 0.0
    %291 = vmatpush2.msra.mxu0 0.0
    %292 = vmatprep.subr.mxu0 0.0
    %293 = vmatpush2.msra.mxu0 0.0
    %294 = vmatprep.subr.mxu0 0.0
    %295 = vmatpush2.msra.mxu0 0.0
    %296 = vmatprep.subr.mxu0 0.0
    %297 = vmatpush2.msra.mxu0 0.0
    %298 = vmatprep.subr.mxu0 0.0
    %299 = vmatpush2.msra.mxu0 0.0
    %300 = vmatprep.subr.mxu0 0.0
    %301 = vmatpush2.msra.mxu0 0.0
    %302 = vmatprep.subr.mxu0 0.0
    %303 = vmatpush2.msra.mxu0 0.0
    %304 = vmatprep.subr.mxu0 0.0
    %305 = vmatpush2.msra.mxu0 0.0
    %306 = vmatprep.subr.mxu0 0.0
    %307 = vmatpush2.msra.mxu0 0.0
    %308 = vmatprep.subr.mxu0 0.0
    %309 = vmatpush2.msra.mxu0 0.0
    %310 = vmatprep.subr.mxu0 0.0
    %311 = vmatpush2.msra.mxu0 0.0
    %312 = vmatprep.subr.mxu0 0.0
    %313 = vmatpush2.msra.mxu0 0.0
    %314 = vmatprep.subr.mxu0 0.0
    %315 = vmatpush2.msra.mxu0 0.0
    %316 = vmatprep.subr.mxu0 0.0
    %317 = vmatpush2.msra.mxu0 0.0
    %318 = vmatprep.subr.mxu0 0.0
    %319 = vmatpush2.msra.mxu0 0.0
    %320 = vmatprep.subr.mxu0 0.0
    %321 = vmatpush2.msra.mxu0 0.0
    %322 = vmatprep.mubr.f32.mxu0 0.0
    %323 = vmatmul.mubr.f32.gmra.mxu0 %v256
    %v324 = vpop.f32.mrf.mxu0
    %v325 = vadd.f32 0.0, %v324
    %v326 = vpop.f32.mrf.mxu0
    %327 = vdwg.mxu0
    %v328 = vmul.f32 %v252, 0.17677669
    %v329 = vmul.f32 %v325, 0.17677669
    %vm330 = vcmask 64512
    %v331 = vsel %vm330, %v328, -inf
    %332 = vmax.xlane.f32.xlu0 %v331
    %v333 = vpop.xlane.xlu0 %332
    %v334 = vsel %vm330, %v329, -inf
    %335 = vmax.xlane.f32.xlu0 %v334
    %v336 = vpop.xlane.xlu0 %335
    %v337 = vsub.f32 %v328, %v333
    %v338 = vsub.f32 %v329, %v336
    %v339 = vmul.f32 %v337, 1.442695
    %v340 = vpow.pop %v339
    %v341 = vmul.f32 %v338, 1.442695
    %v342 = vpow.pop %v341
    %v343 = vsel %vm330, %v340, 0.0
    %344 = vadd.xlane.f32.xlu0 %v343
    %v345 = vpop.xlane.xlu0 %344
    %v346 = vsel %vm330, %v342, 0.0
    %347 = vadd.xlane.f32.xlu0 %v346
    %v348 = vpop.xlane.xlu0 %347
    %v349 = vrcp.pop %v345
    %v350 = vrcp.pop %v348
    %v351 = vmul.f32 %v340, %v349
    %v352 = vmul.f32 %v342, %v350
    %353 = vst.msk [vmem:[#allocation6] sm:$0xff] %vm330, %v351
    %354 = vst.msk [vmem:[#allocation6 + $0x8] sm:$0xff] %vm330, %v352
    %v355 = vld [vmem:[#allocation2] sm:$0xff]
    %v356 = vld [vmem:[#allocation2 + $0x8] sm:$0xff]
    %v358 = vsel %vm330, %v351, 0
    %360 = vmatprep.subr.mxu0 0.0
    %361 = vmatpush1.msra.mxu0 0.0
    %362 = vmatprep.subr.mxu0 0.0
    %363 = vmatpush1.msra.mxu0 0.0
    %364 = vmatprep.subr.mxu0 0.0
    %365 = vmatpush1.msra.mxu0 0.0
    %366 = vmatprep.subr.mxu0 0.0
    %367 = vmatpush1.msra.mxu0 0.0
    %368 = vmatprep.subr.mxu0 0.0
    %369 = vmatpush1.msra.mxu0 0.0
    %370 = vmatprep.subr.mxu0 0.0
    %371 = vmatpush1.msra.mxu0 0.0
    %372 = vmatprep.subr.mxu0 0.0
    %373 = vmatpush1.msra.mxu0 0.0
    %374 = vmatprep.subr.mxu0 0.0
    %375 = vmatpush1.msra.mxu0 0.0
    %376 = vmatprep.subr.mxu0 0.0
    %377 = vmatpush1.msra.mxu0 0.0
    %378 = vmatprep.subr.mxu0 0.0
    %379 = vmatpush1.msra.mxu0 0.0
    %380 = vmatprep.subr.mxu0 0.0
    %381 = vmatpush1.msra.mxu0 0.0
    %382 = vmatprep.subr.mxu0 0.0
    %383 = vmatpush1.msra.mxu0 0.0
    %384 = vmatprep.subr.mxu0 0.0
    %385 = vmatpush1.msra.mxu0 0.0
    %386 = vmatprep.subr.mxu0 0.0
    %387 = vmatpush1.msra.mxu0 0.0
    %388 = vmatprep.subr.mxu0 0.0
    %389 = vmatpush1.msra.mxu0 0.0
    %390 = vmatprep.subr.mxu0 0.0
    %391 = vmatpush1.msra.mxu0 %v355
    %392 = vmatprep.subr.mxu0 0.0
    %393 = vmatpush2.msra.mxu0 0.0
    %394 = vmatprep.subr.mxu0 0.0
    %395 = vmatpush2.msra.mxu0 0.0
    %396 = vmatprep.subr.mxu0 0.0
    %397 = vmatpush2.msra.mxu0 0.0
    %398 = vmatprep.subr.mxu0 0.0
    %399 = vmatpush2.msra.mxu0 0.0
    %400 = vmatprep.subr.mxu0 0.0
    %401 = vmatpush2.msra.mxu0 0.0
    %402 = vmatprep.subr.mxu0 0.0
    %403 = vmatpush2.msra.mxu0 0.0
    %404 = vmatprep.subr.mxu0 0.0
    %405 = vmatpush2.msra.mxu0 0.0
    %406 = vmatprep.subr.mxu0 0.0
    %407 = vmatpush2.msra.mxu0 0.0
    %408 = vmatprep.subr.mxu0 0.0
    %409 = vmatpush2.msra.mxu0 0.0
    %410 = vmatprep.subr.mxu0 0.0
    %411 = vmatpush2.msra.mxu0 0.0
    %412 = vmatprep.subr.mxu0 0.0
    %413 = vmatpush2.msra.mxu0 0.0
    %414 = vmatprep.subr.mxu0 0.0
    %415 = vmatpush2.msra.mxu0 0.0
    %416 = vmatprep.subr.mxu0 0.0
    %417 = vmatpush2.msra.mxu0 0.0
    %418 = vmatprep.subr.mxu0 0.0
    %419 = vmatpush2.msra.mxu0 0.0
    %420 = vmatprep.subr.mxu0 0.0
    %421 = vmatpush2.msra.mxu0 0.0
    %422 = vmatprep.subr.mxu0 0.0
    %423 = vmatpush2.msra.mxu0 0.0
    %424 = vmatprep.mubr.f32.mxu0 0.0
    %425 = vmatmul.mubr.f32.gmra.mxu0 %v358
    %v426 = vpop.f32.mrf.mxu0
    %v427 = vadd.f32 0.0, %v426
    %v428 = vpop.f32.mrf.mxu0
    %429 = vdwg.mxu0
    %v431 = vsel %vm330, %v352, 0
    %433 = vmatprep.subr.mxu0 0.0
    %434 = vmatpush1.msra.mxu0 0.0
    %435 = vmatprep.subr.mxu0 0.0
    %436 = vmatpush1.msra.mxu0 0.0
    %437 = vmatprep.subr.mxu0 0.0
    %438 = vmatpush1.msra.mxu0 0.0
    %439 = vmatprep.subr.mxu0 0.0
    %440 = vmatpush1.msra.mxu0 0.0
    %441 = vmatprep.subr.mxu0 0.0
    %442 = vmatpush1.msra.mxu0 0.0
    %443 = vmatprep.subr.mxu0 0.0
    %444 = vmatpush1.msra.mxu0 0.0
    %445 = vmatprep.subr.mxu0 0.0
    %446 = vmatpush1.msra.mxu0 0.0
    %447 = vmatprep.subr.mxu0 0.0
    %448 = vmatpush1.msra.mxu0 0.0
    %449 = vmatprep.subr.mxu0 0.0
    %450 = vmatpush1.msra.mxu0 0.0
    %451 = vmatprep.subr.mxu0 0.0
    %452 = vmatpush1.msra.mxu0 0.0
    %453 = vmatprep.subr.mxu0 0.0
    %454 = vmatpush1.msra.mxu0 0.0
    %455 = vmatprep.subr.mxu0 0.0
    %456 = vmatpush1.msra.mxu0 0.0
    %457 = vmatprep.subr.mxu0 0.0
    %458 = vmatpush1.msra.mxu0 0.0
    %459 = vmatprep.subr.mxu0 0.0
    %460 = vmatpush1.msra.mxu0 0.0
    %461 = vmatprep.subr.mxu0 0.0
    %462 = vmatpush1.msra.mxu0 0.0
    %463 = vmatprep.subr.mxu0 0.0
    %464 = vmatpush1.msra.mxu0 %v356
    %465 = vmatprep.subr.mxu0 0.0
    %466 = vmatpush2.msra.mxu0 0.0
    %467 = vmatprep.subr.mxu0 0.0
    %468 = vmatpush2.msra.mxu0 0.0
    %469 = vmatprep.subr.mxu0 0.0
    %470 = vmatpush2.msra.mxu0 0.0
    %471 = vmatprep.subr.mxu0 0.0
    %472 = vmatpush2.msra.mxu0 0.0
    %473 = vmatprep.subr.mxu0 0.0
    %474 = vmatpush2.msra.mxu0 0.0
    %475 = vmatprep.subr.mxu0 0.0
    %476 = vmatpush2.msra.mxu0 0.0
    %477 = vmatprep.subr.mxu0 0.0
    %478 = vmatpush2.msra.mxu0 0.0
    %479 = vmatprep.subr.mxu0 0.0
    %480 = vmatpush2.msra.mxu0 0.0
    %481 = vmatprep.subr.mxu0 0.0
    %482 = vmatpush2.msra.mxu0 0.0
    %483 = vmatprep.subr.mxu0 0.0
    %484 = vmatpush2.msra.mxu0 0.0
    %485 = vmatprep.subr.mxu0 0.0
    %486 = vmatpush2.msra.mxu0 0.0
    %487 = vmatprep.subr.mxu0 0.0
    %488 = vmatpush2.msra.mxu0 0.0
    %489 = vmatprep.subr.mxu0 0.0
    %490 = vmatpush2.msra.mxu0 0.0
    %491 = vmatprep.subr.mxu0 0.0
    %492 = vmatpush2.msra.mxu0 0.0
    %493 = vmatprep.subr.mxu0 0.0
    %494 = vmatpush2.msra.mxu0 0.0
    %495 = vmatprep.subr.mxu0 0.0
    %496 = vmatpush2.msra.mxu0 0.0
    %497 = vmatprep.mubr.f32.mxu0 0.0
    %498 = vmatmul.mubr.f32.gmra.mxu0 %v431
    %v499 = vpop.f32.mrf.mxu0
    %v500 = vadd.f32 0.0, %v499
    %v501 = vpop.f32.mrf.mxu0
    %502 = vdwg.mxu0
    %v503 = vsel %vm181, %v427, 0.0
    %504 = vadd.xlane.f32.xlu0 %v503
    %v505 = vpop.xlane.xlu0 %504
    %v506 = vsel %vm181, %v500, 0.0
    %507 = vadd.xlane.f32.xlu0 %v506
    %v508 = vpop.xlane.xlu0 %507
    %v509 = vrcp.pop 32.0
    %v510 = vmul.f32 %v505, %v509
    %v511 = vmul.f32 %v508, %v509
    %v512 = vsub.f32 %v427, %v510
    %v513 = vsub.f32 %v500, %v511
    %v514 = vmul.f32 %v512, %v512
    %v515 = vmul.f32 %v513, %v513
    %v516 = vsel %vm181, %v514, 0.0
    %517 = vadd.xlane.f32.xlu0 %v516
    %v518 = vpop.xlane.xlu0 %517
    %v519 = vsel %vm181, %v515, 0.0
    %520 = vadd.xlane.f32.xlu0 %v519
    %v521 = vpop.xlane.xlu0 %520
    %v522 = vmul.f32 %v518, %v509
    %v523 = vmul.f32 %v521, %v509
    %v524 = vadd.f32 %v522, 1e-05
    %v525 = vadd.f32 %v523, 1e-05
    %v526 = vrsqrt.pop %v524
    %v527 = vrsqrt.pop %v525
    %v528 = vmul.f32 %v512, %v526
    %v529 = vmul.f32 %v513, %v527
    %v530 = vld [vmem:[%s1] sm:$0x1]
    %v532 = vlaneseq
    %v533 = vshrl.u32 %v532, 7
    %v534 = vsub.s32 0, %v533
    %v535 = vrot.slane %v530, %v534
    %v537 = vmul.f32 %v528, %v535
    %v538 = vmul.f32 %v529, %v535
    %v539 = vld [vmem:[%s2] sm:$0x1]
    %v541 = vlaneseq
    %v542 = vshrl.u32 %v541, 7
    %v543 = vsub.s32 0, %v542
    %v544 = vrot.slane %v539, %v543
    %v546 = vadd.f32 %v537, %v544
    %v547 = vadd.f32 %v538, %v544
    %549 = vrot.lane.b32.xlu0 %v547, 32
    %v550 = vpop.permute.xlu0 %549
    %v552 = vsel %vm181, %v546, %v550
    %vm553 = vcmask 523264
    %554 = vst.msk [vmem:[#allocation4] sm:$0xff] %vm553, %v552
    // Predicated region
    $region20: #{tpu_custom_call.1} parent=1 // pred_check
      _
    $region21: #{tpu_custom_call.1} parent=1 // pred_check_branch
      %556 = sbr.rel (0) target = $region23
    $region22: #{tpu_custom_call.1} parent=1 // pred_region
      %s557 = sadd.s32 0, 0
      %s559 = ssub.s32 128, 128
      %560 = vsyncadd [#allocation5], %s559
      %s561 = smul.addr %s557, 128
      %s562 = scalar_lea.hbm %s3, %s561
      %s564 = sshll.u32 [#allocation4], 4
      %s565 = int_to_ptr.vmem [resolvable:$true] %s564
      %567 = dma.vmem_to_hbm [thread:$0]  %s565, 128, %s562, [#allocation5]
    $region23: #{tpu_custom_call.1} parent=1 // pred_fallthru
      _
    // Predicated region
    $region24: #{tpu_custom_call.1} parent=1 // pred_check
      _
    $region25: #{tpu_custom_call.1} parent=1 // pred_check_branch
      %569 = sbr.rel (0) target = $region27
    $region26: #{tpu_custom_call.1} parent=1 // pred_region
      %s570 = sadd.s32 0, 0
      %s572 = ssub.s32 256, 256
      %573 = vsyncadd [#allocation7], %s572
      %s574 = smul.addr %s570, 128
      %s575 = scalar_lea.hbm %s4, %s574
      %s576 = sshll.u32 [#allocation6], 4
      %s577 = int_to_ptr.vmem [resolvable:$true] %s576
      %582 = dma.vmem_to_hbm [thread:$0]  %s577, 256, %s575, [#allocation7], 128, 128, 8
    $region27: #{tpu_custom_call.1} parent=1 // pred_fallthru
      _
    // Predicated region
    $region28: #{tpu_custom_call.1} parent=1 // pred_check
      _
    $region29: #{tpu_custom_call.1} parent=1 // pred_check_branch
      %584 = sbr.rel (0) target = $region31
    $region30: #{tpu_custom_call.1} parent=1 // pred_region
      %585 = dma.done [#allocation5], 128
    $region31: #{tpu_custom_call.1} parent=1 // pred_fallthru
      _
    // Predicated region
    $region32: #{tpu_custom_call.1} parent=1 // pred_check
      _
    $region33: #{tpu_custom_call.1} parent=1 // pred_check_branch
      %587 = sbr.rel (0) target = $region35
    $region34: #{tpu_custom_call.1} parent=1 // pred_region
      %588 = dma.done [#allocation7], 256
    $region35: #{tpu_custom_call.1} parent=1 // pred_fallthru
      _
    %589 = vsyncpa [#allocation5], 1
    %590 = vsyncpa [#allocation7], 1

</llo_original>
